<compile_context>
chip_gen: v6e
topology: v6e:2x2x1
jax: 0.10.0
libtpu: 0.0.40
codegen_flags: <defaults>
</compile_context>

<pallas_src>
import functools
import math

import jax
import jax.numpy as jnp
from jax.experimental import pallas as pl
from jax.experimental.pallas import tpu as pltpu

K = 5   # kernel_size
P = 2   # padding


def _round_up(a, m):
    return (a + m - 1) // m * m


def _choose_lane_layout(H, W):
    """Pick (hpad, wgrp) with hpad >= H+2P, wgrp >= W+2P, hpad*wgrp % 128 == 0,
    minimizing the folded lane count hpad*wgrp."""
    h0 = H + 2 * P
    w0 = W + 2 * P
    best = None
    for hpad in range(h0, h0 + 129):
        step = 128 // math.gcd(hpad, 128)
        wgrp = _round_up(w0, step)
        lanes = hpad * wgrp
        if best is None or lanes < best[2]:
            best = (hpad, wgrp, lanes)
    return best


def _sum_rolls(v, axis, step):
    """sum_{k=-P..P} roll(v, k*step, axis): 5-tap box sum along `axis`.

    Shift set is symmetric, so the result is independent of roll direction
    convention. All shifts are static Python ints (normalized to >= 0).
    """
    n = v.shape[axis]
    out = v
    for k in range(1, P + 1):
        out = out + pltpu.roll(v, (k * step) % n, axis=axis)
        out = out + pltpu.roll(v, (-k * step) % n, axis=axis)
    return out


def _box_sum_kernel(x_ref, o_ref, *, wgrp):
    # x_ref/o_ref: (rows_blk, Hpad * wgrp), lane-dense, whole batch slabs.
    x = x_ref[...].astype(jnp.float32)
    s = _sum_rolls(x, axis=1, step=1)       # W direction (lanes within a group)
    t = _sum_rolls(s, axis=1, step=wgrp)    # H direction (whole lane groups)
    u = _sum_rolls(t, axis=0, step=1)       # D direction (sublane rows)
    o_ref[...] = u.astype(o_ref.dtype)


def box_sum_conv3d(x):
    """Dense equivalent of SparseConv3d(1,1,k=5,s=1,p=2,bias=False, weight=ones).

    x: (B, 1, D, H, W) -> (B, 1, D, H, W)
    """
    B, C, D, H, W = x.shape
    assert C == 1, "SparseConv3d(1, 1, ...) expects a single channel"

    dpad = _round_up(D + 2 * P, 8)          # D rows: P left, >=P right (sublane-aligned)
    hpad, wgrp, lanes = _choose_lane_layout(H, W)

    # Pad once in the wrapper (halo lives in HBM); fold to the lane-dense 2D view.
    xs = x[:, 0]
    xpad = jnp.pad(xs, ((0, 0),
                        (P, dpad - D - P),
                        (P, hpad - H - P),
                        (P, wgrp - W - P)))          # (B, dpad, hpad, wgrp)
    x2 = xpad.reshape(B * dpad, lanes)               # (rows, lanes)

    # Whole batch slabs per grid step; keep >=2 grid steps when B >= 2 (v7x has
    # 2 TensorCores) and cap block bytes to bound vreg/VMEM pressure.
    itemsize = jnp.dtype(x.dtype).itemsize
    slab_bytes = dpad * lanes * max(itemsize, 4)
    cap_bytes = 512 * 1024
    bb = 1
    for cand in range(1, B + 1):
        if B % cand:
            continue
        if cand * slab_bytes > cap_bytes:
            break
        if (B // cand >= 2) or (B == 1):
            bb = cand
    rows_blk = bb * dpad
    grid = (B // bb,)

    # Headroom for double-buffered in/out blocks (f32 worst case) plus margin.
    block_bytes = rows_blk * lanes * 4
    vmem_limit = min(128 * 2**20, max(32 * 2**20, 6 * block_bytes + (2 << 20)))

    out2 = pl.pallas_call(
        functools.partial(_box_sum_kernel, wgrp=wgrp),
        out_shape=jax.ShapeDtypeStruct(x2.shape, x.dtype),
        grid_spec=pltpu.PrefetchScalarGridSpec(
            num_scalar_prefetch=0,
            grid=grid,
            in_specs=[pl.BlockSpec((rows_blk, lanes), lambda i: (i, 0))],
            out_specs=pl.BlockSpec((rows_blk, lanes), lambda i: (i, 0)),
        ),
        compiler_params=pltpu.CompilerParams(
            dimension_semantics=("parallel",),
            vmem_limit_bytes=int(vmem_limit)),
    )(x2)

    out = out2.reshape(B, dpad, hpad, wgrp)[:, P:P + D, P:P + H, P:P + W]
    return out[:, None]                               # (B, 1, D, H, W)


def sparse_conv_net_forward(x_list):
    """Mirrors SparseConvNet.forward: list of (dense) volumes -> list of dense outputs."""
    # TODO(synk): spconv's sparse indice bookkeeping (indice_key='cp0') and
    # occupancy-based tile skipping have no Pallas equivalent here; we compute
    # the dense-equivalent all-ones 5^3 convolution (values match .dense()).
    if len(x_list) > 1 and all(xi.shape == x_list[0].shape for xi in x_list):
        stacked = jnp.concatenate(x_list, axis=0)    # one pallas_call for the whole list
        out = box_sum_conv3d(stacked)
        b = x_list[0].shape[0]
        return [out[i * b:(i + 1) * b] for i in range(len(x_list))]
    return [box_sum_conv3d(xi) for xi in x_list]


def _reference_conv3d(x):
    # Plain-JAX reference: dense conv3d with the all-ones 5^3 kernel.
    w = jnp.ones((1, 1, K, K, K), x.dtype)
    return jax.lax.conv_general_dilated(
        x, w, window_strides=(1, 1, 1), padding=[(P, P)] * 3,
        dimension_numbers=("NCDHW", "OIDHW", "NCDHW"),
        precision=jax.lax.Precision.HIGHEST)


if __name__ == "__main__":
    key = jax.random.PRNGKey(0)
    B, D, H, W = 2, 16, 16, 16

    k1, k2, k3, k4 = jax.random.split(key, 4)

    def make_sparse_volume(kv, km):
        vals = jax.random.normal(kv, (B, 1, D, H, W), jnp.float32)
        mask = jax.random.uniform(km, (B, 1, D, H, W)) < 0.1  # ~10% occupancy
        return jnp.where(mask, vals, 0.0)

    x_list = [make_sparse_volume(k1, k2), make_sparse_volume(k3, k4)]

    outs = sparse_conv_net_forward(x_list)
    outs = [jax.block_until_ready(o) for o in outs]

    for xi, oi in zip(x_list, outs):
        ref = _reference_conv3d(xi)
        assert oi.shape == ref.shape
        assert jnp.allclose(oi, ref, atol=1e-4, rtol=1e-4), "mismatch vs reference conv3d"

    print("KERNEL_OK")
</pallas_src>

<mosaic_0001>
module attributes {stable_mosaic.version = 11 : i64} {
  func.func @_box_sum_kernel(%arg0: i32, %arg1: memref<48x640xf32, #tpu.memory_space<vmem>>, %arg2: memref<48x640xf32, #tpu.memory_space<vmem>>) attributes {dimension_semantics = [#tpu.dimension_semantics<parallel>], iteration_bounds = array<i64: 2>, scalar_prefetch = 0 : i64, scratch_operands = 0 : i64, tpu.core_type = #tpu.core_type<tc>, window_params = [{transform_indices = @transform_0, window_bounds = array<i64: 48, 640>}, {transform_indices = @transform_1, window_bounds = array<i64: 48, 640>}]} {
    %c0 = arith.constant 0 : index
    %c0_0 = arith.constant 0 : index
    %0 = vector.load %arg1[%c0, %c0_0] : memref<48x640xf32, #tpu.memory_space<vmem>>, vector<48x640xf32>
    %c1_i32 = arith.constant 1 : i32
    %1 = tpu.dynamic_rotate %0 by %c1_i32 dim 1 : vector<48x640xf32>, i32 -> vector<48x640xf32>
    %2 = arith.addf %0, %1 : vector<48x640xf32>
    %c639_i32 = arith.constant 639 : i32
    %3 = tpu.dynamic_rotate %0 by %c639_i32 dim 1 : vector<48x640xf32>, i32 -> vector<48x640xf32>
    %4 = arith.addf %2, %3 : vector<48x640xf32>
    %c2_i32 = arith.constant 2 : i32
    %5 = tpu.dynamic_rotate %0 by %c2_i32 dim 1 : vector<48x640xf32>, i32 -> vector<48x640xf32>
    %6 = arith.addf %4, %5 : vector<48x640xf32>
    %c638_i32 = arith.constant 638 : i32
    %7 = tpu.dynamic_rotate %0 by %c638_i32 dim 1 : vector<48x640xf32>, i32 -> vector<48x640xf32>
    %8 = arith.addf %6, %7 : vector<48x640xf32>
    %c32_i32 = arith.constant 32 : i32
    %9 = tpu.dynamic_rotate %8 by %c32_i32 dim 1 : vector<48x640xf32>, i32 -> vector<48x640xf32>
    %10 = arith.addf %8, %9 : vector<48x640xf32>
    %c608_i32 = arith.constant 608 : i32
    %11 = tpu.dynamic_rotate %8 by %c608_i32 dim 1 : vector<48x640xf32>, i32 -> vector<48x640xf32>
    %12 = arith.addf %10, %11 : vector<48x640xf32>
    %c64_i32 = arith.constant 64 : i32
    %13 = tpu.dynamic_rotate %8 by %c64_i32 dim 1 : vector<48x640xf32>, i32 -> vector<48x640xf32>
    %14 = arith.addf %12, %13 : vector<48x640xf32>
    %c576_i32 = arith.constant 576 : i32
    %15 = tpu.dynamic_rotate %8 by %c576_i32 dim 1 : vector<48x640xf32>, i32 -> vector<48x640xf32>
    %16 = arith.addf %14, %15 : vector<48x640xf32>
    %c1_i32_1 = arith.constant 1 : i32
    %17 = tpu.dynamic_rotate %16 by %c1_i32_1 dim 0 : vector<48x640xf32>, i32 -> vector<48x640xf32>
    %18 = arith.addf %16, %17 : vector<48x640xf32>
    %c47_i32 = arith.constant 47 : i32
    %19 = tpu.dynamic_rotate %16 by %c47_i32 dim 0 : vector<48x640xf32>, i32 -> vector<48x640xf32>
    %20 = arith.addf %18, %19 : vector<48x640xf32>
    %c2_i32_2 = arith.constant 2 : i32
    %21 = tpu.dynamic_rotate %16 by %c2_i32_2 dim 0 : vector<48x640xf32>, i32 -> vector<48x640xf32>
    %22 = arith.addf %20, %21 : vector<48x640xf32>
    %c46_i32 = arith.constant 46 : i32
    %23 = tpu.dynamic_rotate %16 by %c46_i32 dim 0 : vector<48x640xf32>, i32 -> vector<48x640xf32>
    %24 = arith.addf %22, %23 : vector<48x640xf32>
    %c0_3 = arith.constant 0 : index
    %c0_4 = arith.constant 0 : index
    %25 = vector.load %arg2[%c0_3, %c0_4] : memref<48x640xf32, #tpu.memory_space<vmem>>, vector<48x640xf32>
    tpu.vector_store %arg2[%c0_3, %c0_4], %24 {strides = array<i32>} : memref<48x640xf32, #tpu.memory_space<vmem>>, vector<48x640xf32>,
    return
  }
  func.func @transform_0(%arg0: i32) -> (i32, i32) {
    %c0_i32 = arith.constant 0 : i32
    %c0_i32_0 = arith.constant 0 : i32
    return %arg0, %c0_i32 : i32, i32
  }
  func.func @transform_1(%arg0: i32) -> (i32, i32) {
    %c0_i32 = arith.constant 0 : i32
    %c0_i32_0 = arith.constant 0 : i32
    return %arg0, %c0_i32 : i32, i32
  }
}

</mosaic_0001>

<llo_original>
// kernel: tpu_custom_call.1
$region0: #{tpu_custom_call.1}
  #allocation0 [shape = 'u32[]', space=smem, size = 0x4, offset = 0x4, fixed_abs, tag = 'smem constant byte address 0x4 - core index']
  #allocation1 [shape = 'u32[144,128]{1,0:T(1,128)}', space=vmem, size = 0x12000, scoped, tag = 'internal scratch']
  %s0 = inlined_call_operand.hbm [shape: f32[96,640], index: 0, kind: input, shape index: {}]
  %s1 = inlined_call_operand.hbm [shape: f32[96,640], index: 1, kind: output, shape index: {}]
  %s2 = sld [smem:[#allocation0]]
  $region41: #{tpu_custom_call.1} parent=0
    _
  %s4 = ssub.s32 1, %s2
  %s5 = scalar_select 0, %s4, %s2
  $region1: #{tpu_custom_call.1} parent=0
    #allocation2 [shape = 'u8[245760]{0}', space=vmem, size = 0x3c000, scoped, tag = 'input window, operand 0']
    #allocation3 [shape = 's32[2]{0}', space=sflag, size = 0x8, scoped, tag = 'scoped memory for tpu_custom_call.1']
    #allocation4 [shape = 's32[2]{0}', space=sflag, size = 0x8, scoped, tag = 'scoped memory for tpu_custom_call.1']
    #allocation5 [shape = 'u8[245760]{0}', space=vmem, size = 0x3c000, scoped, tag = 'output window, operand 0']
    %6 = vsyncpa [#allocation3], 0
    %s7 = scalar_lea.sflag [#allocation3], 1
    %8 = vsyncpa %s7, 0
    %9 = vsyncpa [#allocation4], 0
    %s10 = scalar_lea.sflag [#allocation4], 1
    %11 = vsyncpa %s10, 0
    loop: start=0, step=1, limit=4
    $region2: #{tpu_custom_call.1} parent=1 // loop_pre_header
      _
    $region3: #{tpu_custom_call.1} parent=1 // loop_header
      %s13 = sphi 0, %s17
      %p14 = scmp.ge.s32.totalorder %s13, 4
      %s23 = sphi 0, %s25
      %s26 = sphi 0, %s23
      %s27 = sphi 0, %s26
      %s43 = sphi 0, %s27
      %s49 = sphi 0, %s51
      %s52 = sphi 0, %s49
      %s53 = sphi 0, %s52
      %s69 = sphi 0, %s53
    $region4: #{tpu_custom_call.1} parent=1 // loop_header_branch
      %16 = sbr.rel (%p14) target = $region8
    $region5: #{tpu_custom_call.1} parent=1 // loop_body
      %s18 = ssub.s32 %s13, 1
      %s19 = ssub.s32 %s13, 2
      %s20 = sadd.s32 %s13, 1
      %s21 = ssub.s32 %s13, %s20
      %p22 = scmp.eq.s32.totalorder %s21, 0
      %s24 = sadd.s32 %s23, 1
      %s25 = scalar_select %p22, %s23, %s24
      %p28 = pneg %p22
      %p29 = scmp.eq.s32.totalorder %s13, 1
      %p30 = por %p28, %p29
      %p31 = scmp.ne.s32.totalorder %s23, %s26
      %p32 = scmp.eq.s32.totalorder %s13, 0
      %p33 = por %p31, %p32
      %p34 = scmp.ne.s32.totalorder %s23, %s26
      %p35 = scmp.eq.s32.totalorder %s18, 1
      %p36 = por %p34, %p35
      %p37 = scmp.ne.s32.totalorder %s26, %s27
      %p38 = scmp.eq.s32.totalorder %s18, 0
      %p39 = por %p37, %p38
      %p40 = scmp.ne.s32.totalorder %s26, %s27
      %p41 = scmp.eq.s32.totalorder %s19, 1
      %p42 = por %p40, %p41
      %p44 = scmp.ne.s32.totalorder %s27, %s43
      %p45 = scmp.eq.s32.totalorder %s19, 0
      %p46 = por %p44, %p45
      %s47 = ssub.s32 %s13, %s20
      %p48 = scmp.eq.s32.totalorder %s47, 0
      %s50 = sadd.s32 %s49, 1
      %s51 = scalar_select %p48, %s49, %s50
      %p54 = pneg %p48
      %p55 = scmp.eq.s32.totalorder %s13, 1
      %p56 = por %p54, %p55
      %p57 = scmp.ne.s32.totalorder %s49, %s52
      %p58 = scmp.eq.s32.totalorder %s13, 0
      %p59 = por %p57, %p58
      %p60 = scmp.ne.s32.totalorder %s49, %s52
      %p61 = scmp.eq.s32.totalorder %s18, 1
      %p62 = por %p60, %p61
      %p63 = scmp.ne.s32.totalorder %s52, %s53
      %p64 = scmp.eq.s32.totalorder %s18, 0
      %p65 = por %p63, %p64
      %p66 = scmp.ne.s32.totalorder %s52, %s53
      %p67 = scmp.eq.s32.totalorder %s19, 1
      %p68 = por %p66, %p67
      %p70 = scmp.ne.s32.totalorder %s53, %s69
      %p71 = scmp.eq.s32.totalorder %s19, 0
      %p72 = por %p70, %p71
      %p73 = scmp.le.s32.totalorder 1, %s13
      %p74 = scmp.lt.s32.totalorder %s13, 3
      %p75 = pnand %p73, %p74
      %p76 = pneg %p75
      // Predicated region
      $region9: #{tpu_custom_call.1} parent=5 // pred_check
        _
      $region10: #{tpu_custom_call.1} parent=5 // pred_check_branch
        %78 = sbr.rel (%p75) target = $region12
      $region11: #{tpu_custom_call.1} parent=5 // pred_region
        %s79 = ssub.s32 %s13, 1
      $region12: #{tpu_custom_call.1} parent=5 // pred_fallthru
        _
      %p80 = scmp.lt.s32.totalorder %s13, 2
      // Predicated region
      $region13: #{tpu_custom_call.1} parent=5 // pred_check
        %p81 = pneg %p80
      $region14: #{tpu_custom_call.1} parent=5 // pred_check_branch
        %83 = sbr.rel (%p81) target = $region16
      $region15: #{tpu_custom_call.1} parent=5 // pred_region
        // Predicated region
        $region17: #{tpu_custom_call.1} parent=15 // pred_check
          %p84 = pneg %p33
        $region18: #{tpu_custom_call.1} parent=15 // pred_check_branch
          %86 = sbr.rel (%p84) target = $region20
        $region19: #{tpu_custom_call.1} parent=15 // pred_region
          %s87 = sand.u32 %s23, 1
          %s88 = scalar_lea.sflag [#allocation3], %s87
          %s89 = sand.u32 %s23, 1
          %s90 = smul.addr %s89, 240
          %s91 = scalar_lea.vmem [#allocation2], %s90
          %s92 = smul.u32 6, %s13
          %s94 = ssub.s32 3840, 3840
          %95 = vsyncadd %s88, %s94
          %s96 = smul.addr %s92, 5
          %s97 = smul.addr %s96, 128
          %s98 = scalar_lea.hbm %s0, %s97
          %s99 = sshll.u32 %s91, 4
          %s100 = int_to_ptr.vmem [resolvable:$true] %s99
          %105 = dma.hbm_to_vmem [thread:$0]  %s98, 3840, %s100, %s88, 640, 640, 40
        $region20: #{tpu_custom_call.1} parent=15 // pred_fallthru
          _
      $region16: #{tpu_custom_call.1} parent=5 // pred_fallthru
        _
      %p106 = scmp.le.s32.totalorder 1, %s13
      %p107 = scmp.lt.s32.totalorder %s13, 3
      %p108 = pnand %p106, %p107
      %p109 = pneg %p108
      // Predicated region
      $region21: #{tpu_custom_call.1} parent=5 // pred_check
        _
      $region22: #{tpu_custom_call.1} parent=5 // pred_check_branch
        %111 = sbr.rel (%p108) target = $region24
      $region23: #{tpu_custom_call.1} parent=5 // pred_region
        %s112 = ssub.s32 %s13, 1
        %s113 = sand.u32 %s26, 1
        %s114 = scalar_lea.sflag [#allocation3], %s113
        %s115 = sand.u32 %s26, 1
        %s116 = smul.addr %s115, 240
        %s117 = scalar_lea.vmem [#allocation2], %s116
        // Predicated region
        $region25: #{tpu_custom_call.1} parent=23 // pred_check
          %p118 = pneg %p39
        $region26: #{tpu_custom_call.1} parent=23 // pred_check_branch
          %120 = sbr.rel (%p118) target = $region28
        $region27: #{tpu_custom_call.1} parent=23 // pred_region
          %121 = dma.done %s114, 3840
        $region28: #{tpu_custom_call.1} parent=23 // pred_fallthru
          _
        %s122 = sand.u32 %s26, 1
        %s123 = scalar_lea.sflag [#allocation3], %s122
        %s124 = sand.u32 %s26, 1
        %s125 = smul.addr %s124, 240
        %s126 = scalar_lea.vmem [#allocation2], %s125
        %p127 = pneg %p39
        %p128 = pneg %p36
        %p129 = pneg %p65
        %p130 = pneg %p62
        %s131 = sand.u32 %s52, 1
        %s132 = scalar_lea.sflag [#allocation4], %s131
        %s133 = sand.u32 %s52, 1
        %s134 = smul.addr %s133, 240
        %s135 = scalar_lea.vmem [#allocation5], %s134
        %s136 = smul.u32 6, %s18
        %s137 = smul.u32 6, %s18
        %v138 = vld [vmem:[%s117] sm:$0xff]
        %v139 = vld [vmem:[%s117 + $0x8] sm:$0xff]
        %v140 = vld [vmem:[%s117 + $0x10] sm:$0xff]
        %v141 = vld [vmem:[%s117 + $0x18] sm:$0xff]
        %v142 = vld [vmem:[%s117 + $0x20] sm:$0xff]
        %v143 = vld [vmem:[%s117 + $0x28] sm:$0xff]
        %v144 = vld [vmem:[%s117 + $0x30] sm:$0xff]
        %v145 = vld [vmem:[%s117 + $0x38] sm:$0xff]
        %v146 = vld [vmem:[%s117 + $0x40] sm:$0xff]
        %v147 = vld [vmem:[%s117 + $0x48] sm:$0xff]
        %v148 = vld [vmem:[%s117 + $0x50] sm:$0xff]
        %v149 = vld [vmem:[%s117 + $0x58] sm:$0xff]
        %v150 = vld [vmem:[%s117 + $0x60] sm:$0xff]
        %v151 = vld [vmem:[%s117 + $0x68] sm:$0xff]
        %v152 = vld [vmem:[%s117 + $0x70] sm:$0xff]
        %v153 = vld [vmem:[%s117 + $0x78] sm:$0xff]
        %v154 = vld [vmem:[%s117 + $0x80] sm:$0xff]
        %v155 = vld [vmem:[%s117 + $0x88] sm:$0xff]
        %v156 = vld [vmem:[%s117 + $0x90] sm:$0xff]
        %v157 = vld [vmem:[%s117 + $0x98] sm:$0xff]
        %v158 = vld [vmem:[%s117 + $0xa0] sm:$0xff]
        %v159 = vld [vmem:[%s117 + $0xa8] sm:$0xff]
        %v160 = vld [vmem:[%s117 + $0xb0] sm:$0xff]
        %v161 = vld [vmem:[%s117 + $0xb8] sm:$0xff]
        %v162 = vld [vmem:[%s117 + $0xc0] sm:$0xff]
        %v163 = vld [vmem:[%s117 + $0xc8] sm:$0xff]
        %v164 = vld [vmem:[%s117 + $0xd0] sm:$0xff]
        %v165 = vld [vmem:[%s117 + $0xd8] sm:$0xff]
        %v166 = vld [vmem:[%s117 + $0xe0] sm:$0xff]
        %v167 = vld [vmem:[%s117 + $0xe8] sm:$0xff]
        %168 = vrot.lane.b32.xlu0 %v138, 1
        %v169 = vpop.permute.xlu0 %168
        %170 = vrot.lane.b32.xlu0 %v143, 1
        %v171 = vpop.permute.xlu0 %170
        %172 = vrot.lane.b32.xlu0 %v148, 1
        %v173 = vpop.permute.xlu0 %172
        %174 = vrot.lane.b32.xlu0 %v153, 1
        %v175 = vpop.permute.xlu0 %174
        %176 = vrot.lane.b32.xlu0 %v158, 1
        %v177 = vpop.permute.xlu0 %176
        %178 = vrot.lane.b32.xlu0 %v163, 1
        %v179 = vpop.permute.xlu0 %178
        %180 = vrot.lane.b32.xlu0 %v139, 1
        %v181 = vpop.permute.xlu0 %180
        %182 = vrot.lane.b32.xlu0 %v144, 1
        %v183 = vpop.permute.xlu0 %182
        %184 = vrot.lane.b32.xlu0 %v149, 1
        %v185 = vpop.permute.xlu0 %184
        %186 = vrot.lane.b32.xlu0 %v154, 1
        %v187 = vpop.permute.xlu0 %186
        %188 = vrot.lane.b32.xlu0 %v159, 1
        %v189 = vpop.permute.xlu0 %188
        %190 = vrot.lane.b32.xlu0 %v164, 1
        %v191 = vpop.permute.xlu0 %190
        %192 = vrot.lane.b32.xlu0 %v140, 1
        %v193 = vpop.permute.xlu0 %192
        %194 = vrot.lane.b32.xlu0 %v145, 1
        %v195 = vpop.permute.xlu0 %194
        %196 = vrot.lane.b32.xlu0 %v150, 1
        %v197 = vpop.permute.xlu0 %196
        %198 = vrot.lane.b32.xlu0 %v155, 1
        %v199 = vpop.permute.xlu0 %198
        %200 = vrot.lane.b32.xlu0 %v160, 1
        %v201 = vpop.permute.xlu0 %200
        %202 = vrot.lane.b32.xlu0 %v165, 1
        %v203 = vpop.permute.xlu0 %202
        %204 = vrot.lane.b32.xlu0 %v141, 1
        %v205 = vpop.permute.xlu0 %204
        %206 = vrot.lane.b32.xlu0 %v146, 1
        %v207 = vpop.permute.xlu0 %206
        %208 = vrot.lane.b32.xlu0 %v151, 1
        %v209 = vpop.permute.xlu0 %208
        %210 = vrot.lane.b32.xlu0 %v156, 1
        %v211 = vpop.permute.xlu0 %210
        %212 = vrot.lane.b32.xlu0 %v161, 1
        %v213 = vpop.permute.xlu0 %212
        %214 = vrot.lane.b32.xlu0 %v166, 1
        %v215 = vpop.permute.xlu0 %214
        %216 = vrot.lane.b32.xlu0 %v142, 1
        %v217 = vpop.permute.xlu0 %216
        %218 = vrot.lane.b32.xlu0 %v147, 1
        %v219 = vpop.permute.xlu0 %218
        %220 = vrot.lane.b32.xlu0 %v152, 1
        %v221 = vpop.permute.xlu0 %220
        %222 = vrot.lane.b32.xlu0 %v157, 1
        %v223 = vpop.permute.xlu0 %222
        %224 = vrot.lane.b32.xlu0 %v162, 1
        %v225 = vpop.permute.xlu0 %224
        %226 = vrot.lane.b32.xlu0 %v167, 1
        %v227 = vpop.permute.xlu0 %226
        %v228 = vlaneseq
        %v229 = vand.u32 %v228, 127
        %vm230 = vcmp.lt.s32.totalorder %v229, 1
        %v231 = vsel %vm230, %v205, %v217
        %v232 = vsel %vm230, %v207, %v219
        %v233 = vsel %vm230, %v209, %v221
        %v234 = vsel %vm230, %v211, %v223
        %v235 = vsel %vm230, %v213, %v225
        %v236 = vsel %vm230, %v215, %v227
        %v237 = vsel %vm230, %v193, %v205
        %v238 = vsel %vm230, %v195, %v207
        %v239 = vsel %vm230, %v197, %v209
        %v240 = vsel %vm230, %v199, %v211
        %v241 = vsel %vm230, %v201, %v213
        %v242 = vsel %vm230, %v203, %v215
        %v243 = vsel %vm230, %v181, %v193
        %v244 = vsel %vm230, %v183, %v195
        %v245 = vsel %vm230, %v185, %v197
        %v246 = vsel %vm230, %v187, %v199
        %v247 = vsel %vm230, %v189, %v201
        %v248 = vsel %vm230, %v191, %v203
        %v249 = vsel %vm230, %v169, %v181
        %v250 = vsel %vm230, %v171, %v183
        %v251 = vsel %vm230, %v173, %v185
        %v252 = vsel %vm230, %v175, %v187
        %v253 = vsel %vm230, %v177, %v189
        %v254 = vsel %vm230, %v179, %v191
        %v255 = vsel %vm230, %v217, %v169
        %v256 = vsel %vm230, %v219, %v171
        %v257 = vsel %vm230, %v221, %v173
        %v258 = vsel %vm230, %v223, %v175
        %v259 = vsel %vm230, %v225, %v177
        %v260 = vsel %vm230, %v227, %v179
        %v261 = vadd.f32 %v138, %v255
        %v262 = vadd.f32 %v139, %v249
        %v263 = vadd.f32 %v140, %v243
        %v264 = vadd.f32 %v141, %v237
        %v265 = vadd.f32 %v142, %v231
        %v266 = vadd.f32 %v143, %v256
        %v267 = vadd.f32 %v144, %v250
        %v268 = vadd.f32 %v145, %v244
        %v269 = vadd.f32 %v146, %v238
        %v270 = vadd.f32 %v147, %v232
        %v271 = vadd.f32 %v148, %v257
        %v272 = vadd.f32 %v149, %v251
        %v273 = vadd.f32 %v150, %v245
        %v274 = vadd.f32 %v151, %v239
        %v275 = vadd.f32 %v152, %v233
        %v276 = vadd.f32 %v153, %v258
        %v277 = vadd.f32 %v154, %v252
        %v278 = vadd.f32 %v155, %v246
        %v279 = vadd.f32 %v156, %v240
        %v280 = vadd.f32 %v157, %v234
        %v281 = vadd.f32 %v158, %v259
        %v282 = vadd.f32 %v159, %v253
        %v283 = vadd.f32 %v160, %v247
        %v284 = vadd.f32 %v161, %v241
        %v285 = vadd.f32 %v162, %v235
        %v286 = vadd.f32 %v163, %v260
        %v287 = vadd.f32 %v164, %v254
        %v288 = vadd.f32 %v165, %v248
        %v289 = vadd.f32 %v166, %v242
        %v290 = vadd.f32 %v167, %v236
        %291 = vrot.lane.b32.xlu0 %v138, 127
        %v292 = vpop.permute.xlu0 %291
        %293 = vrot.lane.b32.xlu0 %v143, 127
        %v294 = vpop.permute.xlu0 %293
        %295 = vrot.lane.b32.xlu0 %v148, 127
        %v296 = vpop.permute.xlu0 %295
        %297 = vrot.lane.b32.xlu0 %v153, 127
        %v298 = vpop.permute.xlu0 %297
        %299 = vrot.lane.b32.xlu0 %v158, 127
        %v300 = vpop.permute.xlu0 %299
        %301 = vrot.lane.b32.xlu0 %v163, 127
        %v302 = vpop.permute.xlu0 %301
        %303 = vrot.lane.b32.xlu0 %v139, 127
        %v304 = vpop.permute.xlu0 %303
        %305 = vrot.lane.b32.xlu0 %v144, 127
        %v306 = vpop.permute.xlu0 %305
        %307 = vrot.lane.b32.xlu0 %v149, 127
        %v308 = vpop.permute.xlu0 %307
        %309 = vrot.lane.b32.xlu0 %v154, 127
        %v310 = vpop.permute.xlu0 %309
        %311 = vrot.lane.b32.xlu0 %v159, 127
        %v312 = vpop.permute.xlu0 %311
        %313 = vrot.lane.b32.xlu0 %v164, 127
        %v314 = vpop.permute.xlu0 %313
        %315 = vrot.lane.b32.xlu0 %v140, 127
        %v316 = vpop.permute.xlu0 %315
        %317 = vrot.lane.b32.xlu0 %v145, 127
        %v318 = vpop.permute.xlu0 %317
        %319 = vrot.lane.b32.xlu0 %v150, 127
        %v320 = vpop.permute.xlu0 %319
        %321 = vrot.lane.b32.xlu0 %v155, 127
        %v322 = vpop.permute.xlu0 %321
        %323 = vrot.lane.b32.xlu0 %v160, 127
        %v324 = vpop.permute.xlu0 %323
        %325 = vrot.lane.b32.xlu0 %v165, 127
        %v326 = vpop.permute.xlu0 %325
        %327 = vrot.lane.b32.xlu0 %v141, 127
        %v328 = vpop.permute.xlu0 %327
        %329 = vrot.lane.b32.xlu0 %v146, 127
        %v330 = vpop.permute.xlu0 %329
        %331 = vrot.lane.b32.xlu0 %v151, 127
        %v332 = vpop.permute.xlu0 %331
        %333 = vrot.lane.b32.xlu0 %v156, 127
        %v334 = vpop.permute.xlu0 %333
        %335 = vrot.lane.b32.xlu0 %v161, 127
        %v336 = vpop.permute.xlu0 %335
        %337 = vrot.lane.b32.xlu0 %v166, 127
        %v338 = vpop.permute.xlu0 %337
        %339 = vrot.lane.b32.xlu0 %v142, 127
        %v340 = vpop.permute.xlu0 %339
        %341 = vrot.lane.b32.xlu0 %v147, 127
        %v342 = vpop.permute.xlu0 %341
        %343 = vrot.lane.b32.xlu0 %v152, 127
        %v344 = vpop.permute.xlu0 %343
        %345 = vrot.lane.b32.xlu0 %v157, 127
        %v346 = vpop.permute.xlu0 %345
        %347 = vrot.lane.b32.xlu0 %v162, 127
        %v348 = vpop.permute.xlu0 %347
        %349 = vrot.lane.b32.xlu0 %v167, 127
        %v350 = vpop.permute.xlu0 %349
        %vm351 = vcmp.lt.s32.totalorder %v229, 127
        %v352 = vsel %vm351, %v328, %v340
        %v353 = vsel %vm351, %v330, %v342
        %v354 = vsel %vm351, %v332, %v344
        %v355 = vsel %vm351, %v334, %v346
        %v356 = vsel %vm351, %v336, %v348
        %v357 = vsel %vm351, %v338, %v350
        %v358 = vsel %vm351, %v316, %v328
        %v359 = vsel %vm351, %v318, %v330
        %v360 = vsel %vm351, %v320, %v332
        %v361 = vsel %vm351, %v322, %v334
        %v362 = vsel %vm351, %v324, %v336
        %v363 = vsel %vm351, %v326, %v338
        %v364 = vsel %vm351, %v304, %v316
        %v365 = vsel %vm351, %v306, %v318
        %v366 = vsel %vm351, %v308, %v320
        %v367 = vsel %vm351, %v310, %v322
        %v368 = vsel %vm351, %v312, %v324
        %v369 = vsel %vm351, %v314, %v326
        %v370 = vsel %vm351, %v292, %v304
        %v371 = vsel %vm351, %v294, %v306
        %v372 = vsel %vm351, %v296, %v308
        %v373 = vsel %vm351, %v298, %v310
        %v374 = vsel %vm351, %v300, %v312
        %v375 = vsel %vm351, %v302, %v314
        %v376 = vsel %vm351, %v340, %v292
        %v377 = vsel %vm351, %v342, %v294
        %v378 = vsel %vm351, %v344, %v296
        %v379 = vsel %vm351, %v346, %v298
        %v380 = vsel %vm351, %v348, %v300
        %v381 = vsel %vm351, %v350, %v302
        %v382 = vadd.f32 %v261, %v370
        %v383 = vadd.f32 %v262, %v364
        %v384 = vadd.f32 %v263, %v358
        %v385 = vadd.f32 %v264, %v352
        %v386 = vadd.f32 %v265, %v376
        %v387 = vadd.f32 %v266, %v371
        %v388 = vadd.f32 %v267, %v365
        %v389 = vadd.f32 %v268, %v359
        %v390 = vadd.f32 %v269, %v353
        %v391 = vadd.f32 %v270, %v377
        %v392 = vadd.f32 %v271, %v372
        %v393 = vadd.f32 %v272, %v366
        %v394 = vadd.f32 %v273, %v360
        %v395 = vadd.f32 %v274, %v354
        %v396 = vadd.f32 %v275, %v378
        %v397 = vadd.f32 %v276, %v373
        %v398 = vadd.f32 %v277, %v367
        %v399 = vadd.f32 %v278, %v361
        %v400 = vadd.f32 %v279, %v355
        %v401 = vadd.f32 %v280, %v379
        %v402 = vadd.f32 %v281, %v374
        %v403 = vadd.f32 %v282, %v368
        %v404 = vadd.f32 %v283, %v362
        %v405 = vadd.f32 %v284, %v356
        %v406 = vadd.f32 %v285, %v380
        %v407 = vadd.f32 %v286, %v375
        %v408 = vadd.f32 %v287, %v369
        %v409 = vadd.f32 %v288, %v363
        %v410 = vadd.f32 %v289, %v357
        %v411 = vadd.f32 %v290, %v381
        %412 = vrot.lane.b32.xlu0 %v138, 2
        %v413 = vpop.permute.xlu0 %412
        %414 = vrot.lane.b32.xlu0 %v143, 2
        %v415 = vpop.permute.xlu0 %414
        %416 = vrot.lane.b32.xlu0 %v148, 2
        %v417 = vpop.permute.xlu0 %416
        %418 = vrot.lane.b32.xlu0 %v153, 2
        %v419 = vpop.permute.xlu0 %418
        %420 = vrot.lane.b32.xlu0 %v158, 2
        %v421 = vpop.permute.xlu0 %420
        %422 = vrot.lane.b32.xlu0 %v163, 2
        %v423 = vpop.permute.xlu0 %422
        %424 = vrot.lane.b32.xlu0 %v139, 2
        %v425 = vpop.permute.xlu0 %424
        %426 = vrot.lane.b32.xlu0 %v144, 2
        %v427 = vpop.permute.xlu0 %426
        %428 = vrot.lane.b32.xlu0 %v149, 2
        %v429 = vpop.permute.xlu0 %428
        %430 = vrot.lane.b32.xlu0 %v154, 2
        %v431 = vpop.permute.xlu0 %430
        %432 = vrot.lane.b32.xlu0 %v159, 2
        %v433 = vpop.permute.xlu0 %432
        %434 = vrot.lane.b32.xlu0 %v164, 2
        %v435 = vpop.permute.xlu0 %434
        %436 = vrot.lane.b32.xlu0 %v140, 2
        %v437 = vpop.permute.xlu0 %436
        %438 = vrot.lane.b32.xlu0 %v145, 2
        %v439 = vpop.permute.xlu0 %438
        %440 = vrot.lane.b32.xlu0 %v150, 2
        %v441 = vpop.permute.xlu0 %440
        %442 = vrot.lane.b32.xlu0 %v155, 2
        %v443 = vpop.permute.xlu0 %442
        %444 = vrot.lane.b32.xlu0 %v160, 2
        %v445 = vpop.permute.xlu0 %444
        %446 = vrot.lane.b32.xlu0 %v165, 2
        %v447 = vpop.permute.xlu0 %446
        %448 = vrot.lane.b32.xlu0 %v141, 2
        %v449 = vpop.permute.xlu0 %448
        %450 = vrot.lane.b32.xlu0 %v146, 2
        %v451 = vpop.permute.xlu0 %450
        %452 = vrot.lane.b32.xlu0 %v151, 2
        %v453 = vpop.permute.xlu0 %452
        %454 = vrot.lane.b32.xlu0 %v156, 2
        %v455 = vpop.permute.xlu0 %454
        %456 = vrot.lane.b32.xlu0 %v161, 2
        %v457 = vpop.permute.xlu0 %456
        %458 = vrot.lane.b32.xlu0 %v166, 2
        %v459 = vpop.permute.xlu0 %458
        %460 = vrot.lane.b32.xlu0 %v142, 2
        %v461 = vpop.permute.xlu0 %460
        %462 = vrot.lane.b32.xlu0 %v147, 2
        %v463 = vpop.permute.xlu0 %462
        %464 = vrot.lane.b32.xlu0 %v152, 2
        %v465 = vpop.permute.xlu0 %464
        %466 = vrot.lane.b32.xlu0 %v157, 2
        %v467 = vpop.permute.xlu0 %466
        %468 = vrot.lane.b32.xlu0 %v162, 2
        %v469 = vpop.permute.xlu0 %468
        %470 = vrot.lane.b32.xlu0 %v167, 2
        %v471 = vpop.permute.xlu0 %470
        %vm472 = vcmp.lt.s32.totalorder %v229, 2
        %v473 = vsel %vm472, %v449, %v461
        %v474 = vsel %vm472, %v451, %v463
        %v475 = vsel %vm472, %v453, %v465
        %v476 = vsel %vm472, %v455, %v467
        %v477 = vsel %vm472, %v457, %v469
        %v478 = vsel %vm472, %v459, %v471
        %v479 = vsel %vm472, %v437, %v449
        %v480 = vsel %vm472, %v439, %v451
        %v481 = vsel %vm472, %v441, %v453
        %v482 = vsel %vm472, %v443, %v455
        %v483 = vsel %vm472, %v445, %v457
        %v484 = vsel %vm472, %v447, %v459
        %v485 = vsel %vm472, %v425, %v437
        %v486 = vsel %vm472, %v427, %v439
        %v487 = vsel %vm472, %v429, %v441
        %v488 = vsel %vm472, %v431, %v443
        %v489 = vsel %vm472, %v433, %v445
        %v490 = vsel %vm472, %v435, %v447
        %v491 = vsel %vm472, %v413, %v425
        %v492 = vsel %vm472, %v415, %v427
        %v493 = vsel %vm472, %v417, %v429
        %v494 = vsel %vm472, %v419, %v431
        %v495 = vsel %vm472, %v421, %v433
        %v496 = vsel %vm472, %v423, %v435
        %v497 = vsel %vm472, %v461, %v413
        %v498 = vsel %vm472, %v463, %v415
        %v499 = vsel %vm472, %v465, %v417
        %v500 = vsel %vm472, %v467, %v419
        %v501 = vsel %vm472, %v469, %v421
        %v502 = vsel %vm472, %v471, %v423
        %v503 = vadd.f32 %v382, %v497
        %v504 = vadd.f32 %v383, %v491
        %v505 = vadd.f32 %v384, %v485
        %v506 = vadd.f32 %v385, %v479
        %v507 = vadd.f32 %v386, %v473
        %v508 = vadd.f32 %v387, %v498
        %v509 = vadd.f32 %v388, %v492
        %v510 = vadd.f32 %v389, %v486
        %v511 = vadd.f32 %v390, %v480
        %v512 = vadd.f32 %v391, %v474
        %v513 = vadd.f32 %v392, %v499
        %v514 = vadd.f32 %v393, %v493
        %v515 = vadd.f32 %v394, %v487
        %v516 = vadd.f32 %v395, %v481
        %v517 = vadd.f32 %v396, %v475
        %v518 = vadd.f32 %v397, %v500
        %v519 = vadd.f32 %v398, %v494
        %v520 = vadd.f32 %v399, %v488
        %v521 = vadd.f32 %v400, %v482
        %v522 = vadd.f32 %v401, %v476
        %v523 = vadd.f32 %v402, %v501
        %v524 = vadd.f32 %v403, %v495
        %v525 = vadd.f32 %v404, %v489
        %v526 = vadd.f32 %v405, %v483
        %v527 = vadd.f32 %v406, %v477
        %v528 = vadd.f32 %v407, %v502
        %v529 = vadd.f32 %v408, %v496
        %v530 = vadd.f32 %v409, %v490
        %v531 = vadd.f32 %v410, %v484
        %v532 = vadd.f32 %v411, %v478
        %533 = vrot.lane.b32.xlu0 %v138, 126
        %v534 = vpop.permute.xlu0 %533
        %535 = vrot.lane.b32.xlu0 %v143, 126
        %v536 = vpop.permute.xlu0 %535
        %537 = vrot.lane.b32.xlu0 %v148, 126
        %v538 = vpop.permute.xlu0 %537
        %539 = vrot.lane.b32.xlu0 %v153, 126
        %v540 = vpop.permute.xlu0 %539
        %541 = vrot.lane.b32.xlu0 %v158, 126
        %v542 = vpop.permute.xlu0 %541
        %543 = vrot.lane.b32.xlu0 %v163, 126
        %v544 = vpop.permute.xlu0 %543
        %545 = vrot.lane.b32.xlu0 %v139, 126
        %v546 = vpop.permute.xlu0 %545
        %547 = vrot.lane.b32.xlu0 %v144, 126
        %v548 = vpop.permute.xlu0 %547
        %549 = vrot.lane.b32.xlu0 %v149, 126
        %v550 = vpop.permute.xlu0 %549
        %551 = vrot.lane.b32.xlu0 %v154, 126
        %v552 = vpop.permute.xlu0 %551
        %553 = vrot.lane.b32.xlu0 %v159, 126
        %v554 = vpop.permute.xlu0 %553
        %555 = vrot.lane.b32.xlu0 %v164, 126
        %v556 = vpop.permute.xlu0 %555
        %557 = vrot.lane.b32.xlu0 %v140, 126
        %v558 = vpop.permute.xlu0 %557
        %559 = vrot.lane.b32.xlu0 %v145, 126
        %v560 = vpop.permute.xlu0 %559
        %561 = vrot.lane.b32.xlu0 %v150, 126
        %v562 = vpop.permute.xlu0 %561
        %563 = vrot.lane.b32.xlu0 %v155, 126
        %v564 = vpop.permute.xlu0 %563
        %565 = vrot.lane.b32.xlu0 %v160, 126
        %v566 = vpop.permute.xlu0 %565
        %567 = vrot.lane.b32.xlu0 %v165, 126
        %v568 = vpop.permute.xlu0 %567
        %569 = vrot.lane.b32.xlu0 %v141, 126
        %v570 = vpop.permute.xlu0 %569
        %571 = vrot.lane.b32.xlu0 %v146, 126
        %v572 = vpop.permute.xlu0 %571
        %573 = vrot.lane.b32.xlu0 %v151, 126
        %v574 = vpop.permute.xlu0 %573
        %575 = vrot.lane.b32.xlu0 %v156, 126
        %v576 = vpop.permute.xlu0 %575
        %577 = vrot.lane.b32.xlu0 %v161, 126
        %v578 = vpop.permute.xlu0 %577
        %579 = vrot.lane.b32.xlu0 %v166, 126
        %v580 = vpop.permute.xlu0 %579
        %581 = vrot.lane.b32.xlu0 %v142, 126
        %v582 = vpop.permute.xlu0 %581
        %583 = vrot.lane.b32.xlu0 %v147, 126
        %v584 = vpop.permute.xlu0 %583
        %585 = vrot.lane.b32.xlu0 %v152, 126
        %v586 = vpop.permute.xlu0 %585
        %587 = vrot.lane.b32.xlu0 %v157, 126
        %v588 = vpop.permute.xlu0 %587
        %589 = vrot.lane.b32.xlu0 %v162, 126
        %v590 = vpop.permute.xlu0 %589
        %591 = vrot.lane.b32.xlu0 %v167, 126
        %v592 = vpop.permute.xlu0 %591
        %vm593 = vcmp.lt.s32.totalorder %v229, 126
        %v594 = vsel %vm593, %v570, %v582
        %v595 = vsel %vm593, %v572, %v584
        %v596 = vsel %vm593, %v574, %v586
        %v597 = vsel %vm593, %v576, %v588
        %v598 = vsel %vm593, %v578, %v590
        %v599 = vsel %vm593, %v580, %v592
        %v600 = vsel %vm593, %v558, %v570
        %v601 = vsel %vm593, %v560, %v572
        %v602 = vsel %vm593, %v562, %v574
        %v603 = vsel %vm593, %v564, %v576
        %v604 = vsel %vm593, %v566, %v578
        %v605 = vsel %vm593, %v568, %v580
        %v606 = vsel %vm593, %v546, %v558
        %v607 = vsel %vm593, %v548, %v560
        %v608 = vsel %vm593, %v550, %v562
        %v609 = vsel %vm593, %v552, %v564
        %v610 = vsel %vm593, %v554, %v566
        %v611 = vsel %vm593, %v556, %v568
        %v612 = vsel %vm593, %v534, %v546
        %v613 = vsel %vm593, %v536, %v548
        %v614 = vsel %vm593, %v538, %v550
        %v615 = vsel %vm593, %v540, %v552
        %v616 = vsel %vm593, %v542, %v554
        %v617 = vsel %vm593, %v544, %v556
        %v618 = vsel %vm593, %v582, %v534
        %v619 = vsel %vm593, %v584, %v536
        %v620 = vsel %vm593, %v586, %v538
        %v621 = vsel %vm593, %v588, %v540
        %v622 = vsel %vm593, %v590, %v542
        %v623 = vsel %vm593, %v592, %v544
        %v624 = vadd.f32 %v503, %v612
        %v625 = vadd.f32 %v504, %v606
        %v626 = vadd.f32 %v505, %v600
        %v627 = vadd.f32 %v506, %v594
        %v628 = vadd.f32 %v507, %v618
        %v629 = vadd.f32 %v508, %v613
        %v630 = vadd.f32 %v509, %v607
        %v631 = vadd.f32 %v510, %v601
        %v632 = vadd.f32 %v511, %v595
        %v633 = vadd.f32 %v512, %v619
        %v634 = vadd.f32 %v513, %v614
        %v635 = vadd.f32 %v514, %v608
        %v636 = vadd.f32 %v515, %v602
        %v637 = vadd.f32 %v516, %v596
        %v638 = vadd.f32 %v517, %v620
        %v639 = vadd.f32 %v518, %v615
        %v640 = vadd.f32 %v519, %v609
        %v641 = vadd.f32 %v520, %v603
        %v642 = vadd.f32 %v521, %v597
        %v643 = vadd.f32 %v522, %v621
        %v644 = vadd.f32 %v523, %v616
        %v645 = vadd.f32 %v524, %v610
        %v646 = vadd.f32 %v525, %v604
        %v647 = vadd.f32 %v526, %v598
        %v648 = vadd.f32 %v527, %v622
        %v649 = vadd.f32 %v528, %v617
        %v650 = vadd.f32 %v529, %v611
        %v651 = vadd.f32 %v530, %v605
        %v652 = vadd.f32 %v531, %v599
        %v653 = vadd.f32 %v532, %v623
        %654 = vrot.lane.b32.xlu0 %v624, 32
        %v655 = vpop.permute.xlu0 %654
        %656 = vrot.lane.b32.xlu0 %v629, 32
        %v657 = vpop.permute.xlu0 %656
        %658 = vrot.lane.b32.xlu0 %v634, 32
        %v659 = vpop.permute.xlu0 %658
        %660 = vrot.lane.b32.xlu0 %v639, 32
        %v661 = vpop.permute.xlu0 %660
        %662 = vrot.lane.b32.xlu0 %v644, 32
        %v663 = vpop.permute.xlu0 %662
        %664 = vrot.lane.b32.xlu0 %v649, 32
        %v665 = vpop.permute.xlu0 %664
        %666 = vrot.lane.b32.xlu0 %v625, 32
        %v667 = vpop.permute.xlu0 %666
        %668 = vrot.lane.b32.xlu0 %v630, 32
        %v669 = vpop.permute.xlu0 %668
        %670 = vrot.lane.b32.xlu0 %v635, 32
        %v671 = vpop.permute.xlu0 %670
        %672 = vrot.lane.b32.xlu0 %v640, 32
        %v673 = vpop.permute.xlu0 %672
        %674 = vrot.lane.b32.xlu0 %v645, 32
        %v675 = vpop.permute.xlu0 %674
        %676 = vrot.lane.b32.xlu0 %v650, 32
        %v677 = vpop.permute.xlu0 %676
        %678 = vrot.lane.b32.xlu0 %v626, 32
        %v679 = vpop.permute.xlu0 %678
        %680 = vrot.lane.b32.xlu0 %v631, 32
        %v681 = vpop.permute.xlu0 %680
        %682 = vrot.lane.b32.xlu0 %v636, 32
        %v683 = vpop.permute.xlu0 %682
        %684 = vrot.lane.b32.xlu0 %v641, 32
        %v685 = vpop.permute.xlu0 %684
        %686 = vrot.lane.b32.xlu0 %v646, 32
        %v687 = vpop.permute.xlu0 %686
        %688 = vrot.lane.b32.xlu0 %v651, 32
        %v689 = vpop.permute.xlu0 %688
        %690 = vrot.lane.b32.xlu0 %v627, 32
        %v691 = vpop.permute.xlu0 %690
        %692 = vrot.lane.b32.xlu0 %v632, 32
        %v693 = vpop.permute.xlu0 %692
        %694 = vrot.lane.b32.xlu0 %v637, 32
        %v695 = vpop.permute.xlu0 %694
        %696 = vrot.lane.b32.xlu0 %v642, 32
        %v697 = vpop.permute.xlu0 %696
        %698 = vrot.lane.b32.xlu0 %v647, 32
        %v699 = vpop.permute.xlu0 %698
        %700 = vrot.lane.b32.xlu0 %v652, 32
        %v701 = vpop.permute.xlu0 %700
        %702 = vrot.lane.b32.xlu0 %v628, 32
        %v703 = vpop.permute.xlu0 %702
        %704 = vrot.lane.b32.xlu0 %v633, 32
        %v705 = vpop.permute.xlu0 %704
        %706 = vrot.lane.b32.xlu0 %v638, 32
        %v707 = vpop.permute.xlu0 %706
        %708 = vrot.lane.b32.xlu0 %v643, 32
        %v709 = vpop.permute.xlu0 %708
        %710 = vrot.lane.b32.xlu0 %v648, 32
        %v711 = vpop.permute.xlu0 %710
        %712 = vrot.lane.b32.xlu0 %v653, 32
        %v713 = vpop.permute.xlu0 %712
        %vm714 = vcmp.lt.s32.totalorder %v229, 32
        %v715 = vsel %vm714, %v691, %v703
        %v716 = vsel %vm714, %v693, %v705
        %v717 = vsel %vm714, %v695, %v707
        %v718 = vsel %vm714, %v697, %v709
        %v719 = vsel %vm714, %v699, %v711
        %v720 = vsel %vm714, %v701, %v713
        %v721 = vsel %vm714, %v679, %v691
        %v722 = vsel %vm714, %v681, %v693
        %v723 = vsel %vm714, %v683, %v695
        %v724 = vsel %vm714, %v685, %v697
        %v725 = vsel %vm714, %v687, %v699
        %v726 = vsel %vm714, %v689, %v701
        %v727 = vsel %vm714, %v667, %v679
        %v728 = vsel %vm714, %v669, %v681
        %v729 = vsel %vm714, %v671, %v683
        %v730 = vsel %vm714, %v673, %v685
        %v731 = vsel %vm714, %v675, %v687
        %v732 = vsel %vm714, %v677, %v689
        %v733 = vsel %vm714, %v655, %v667
        %v734 = vsel %vm714, %v657, %v669
        %v735 = vsel %vm714, %v659, %v671
        %v736 = vsel %vm714, %v661, %v673
        %v737 = vsel %vm714, %v663, %v675
        %v738 = vsel %vm714, %v665, %v677
        %v739 = vsel %vm714, %v703, %v655
        %v740 = vsel %vm714, %v705, %v657
        %v741 = vsel %vm714, %v707, %v659
        %v742 = vsel %vm714, %v709, %v661
        %v743 = vsel %vm714, %v711, %v663
        %v744 = vsel %vm714, %v713, %v665
        %v745 = vadd.f32 %v624, %v739
        %v746 = vadd.f32 %v625, %v733
        %v747 = vadd.f32 %v626, %v727
        %v748 = vadd.f32 %v627, %v721
        %v749 = vadd.f32 %v628, %v715
        %v750 = vadd.f32 %v629, %v740
        %v751 = vadd.f32 %v630, %v734
        %v752 = vadd.f32 %v631, %v728
        %v753 = vadd.f32 %v632, %v722
        %v754 = vadd.f32 %v633, %v716
        %v755 = vadd.f32 %v634, %v741
        %v756 = vadd.f32 %v635, %v735
        %v757 = vadd.f32 %v636, %v729
        %v758 = vadd.f32 %v637, %v723
        %v759 = vadd.f32 %v638, %v717
        %v760 = vadd.f32 %v639, %v742
        %v761 = vadd.f32 %v640, %v736
        %v762 = vadd.f32 %v641, %v730
        %v763 = vadd.f32 %v642, %v724
        %v764 = vadd.f32 %v643, %v718
        %v765 = vadd.f32 %v644, %v743
        %v766 = vadd.f32 %v645, %v737
        %v767 = vadd.f32 %v646, %v731
        %v768 = vadd.f32 %v647, %v725
        %v769 = vadd.f32 %v648, %v719
        %v770 = vadd.f32 %v649, %v744
        %v771 = vadd.f32 %v650, %v738
        %v772 = vadd.f32 %v651, %v732
        %v773 = vadd.f32 %v652, %v726
        %v774 = vadd.f32 %v653, %v720
        %775 = vrot.lane.b32.xlu0 %v624, 96
        %v776 = vpop.permute.xlu0 %775
        %777 = vrot.lane.b32.xlu0 %v629, 96
        %v778 = vpop.permute.xlu0 %777
        %779 = vrot.lane.b32.xlu0 %v634, 96
        %v780 = vpop.permute.xlu0 %779
        %781 = vrot.lane.b32.xlu0 %v639, 96
        %v782 = vpop.permute.xlu0 %781
        %783 = vrot.lane.b32.xlu0 %v644, 96
        %v784 = vpop.permute.xlu0 %783
        %785 = vrot.lane.b32.xlu0 %v649, 96
        %v786 = vpop.permute.xlu0 %785
        %787 = vrot.lane.b32.xlu0 %v625, 96
        %v788 = vpop.permute.xlu0 %787
        %789 = vrot.lane.b32.xlu0 %v630, 96
        %v790 = vpop.permute.xlu0 %789
        %791 = vrot.lane.b32.xlu0 %v635, 96
        %v792 = vpop.permute.xlu0 %791
        %793 = vrot.lane.b32.xlu0 %v640, 96
        %v794 = vpop.permute.xlu0 %793
        %795 = vrot.lane.b32.xlu0 %v645, 96
        %v796 = vpop.permute.xlu0 %795
        %797 = vrot.lane.b32.xlu0 %v650, 96
        %v798 = vpop.permute.xlu0 %797
        %799 = vrot.lane.b32.xlu0 %v626, 96
        %v800 = vpop.permute.xlu0 %799
        %801 = vrot.lane.b32.xlu0 %v631, 96
        %v802 = vpop.permute.xlu0 %801
        %803 = vrot.lane.b32.xlu0 %v636, 96
        %v804 = vpop.permute.xlu0 %803
        %805 = vrot.lane.b32.xlu0 %v641, 96
        %v806 = vpop.permute.xlu0 %805
        %807 = vrot.lane.b32.xlu0 %v646, 96
        %v808 = vpop.permute.xlu0 %807
        %809 = vrot.lane.b32.xlu0 %v651, 96
        %v810 = vpop.permute.xlu0 %809
        %811 = vrot.lane.b32.xlu0 %v627, 96
        %v812 = vpop.permute.xlu0 %811
        %813 = vrot.lane.b32.xlu0 %v632, 96
        %v814 = vpop.permute.xlu0 %813
        %815 = vrot.lane.b32.xlu0 %v637, 96
        %v816 = vpop.permute.xlu0 %815
        %817 = vrot.lane.b32.xlu0 %v642, 96
        %v818 = vpop.permute.xlu0 %817
        %819 = vrot.lane.b32.xlu0 %v647, 96
        %v820 = vpop.permute.xlu0 %819
        %821 = vrot.lane.b32.xlu0 %v652, 96
        %v822 = vpop.permute.xlu0 %821
        %823 = vrot.lane.b32.xlu0 %v628, 96
        %v824 = vpop.permute.xlu0 %823
        %825 = vrot.lane.b32.xlu0 %v633, 96
        %v826 = vpop.permute.xlu0 %825
        %827 = vrot.lane.b32.xlu0 %v638, 96
        %v828 = vpop.permute.xlu0 %827
        %829 = vrot.lane.b32.xlu0 %v643, 96
        %v830 = vpop.permute.xlu0 %829
        %831 = vrot.lane.b32.xlu0 %v648, 96
        %v832 = vpop.permute.xlu0 %831
        %833 = vrot.lane.b32.xlu0 %v653, 96
        %v834 = vpop.permute.xlu0 %833
        %vm835 = vcmp.lt.s32.totalorder %v229, 96
        %v836 = vsel %vm835, %v812, %v824
        %v837 = vsel %vm835, %v814, %v826
        %v838 = vsel %vm835, %v816, %v828
        %v839 = vsel %vm835, %v818, %v830
        %v840 = vsel %vm835, %v820, %v832
        %v841 = vsel %vm835, %v822, %v834
        %v842 = vsel %vm835, %v800, %v812
        %v843 = vsel %vm835, %v802, %v814
        %v844 = vsel %vm835, %v804, %v816
        %v845 = vsel %vm835, %v806, %v818
        %v846 = vsel %vm835, %v808, %v820
        %v847 = vsel %vm835, %v810, %v822
        %v848 = vsel %vm835, %v788, %v800
        %v849 = vsel %vm835, %v790, %v802
        %v850 = vsel %vm835, %v792, %v804
        %v851 = vsel %vm835, %v794, %v806
        %v852 = vsel %vm835, %v796, %v808
        %v853 = vsel %vm835, %v798, %v810
        %v854 = vsel %vm835, %v776, %v788
        %v855 = vsel %vm835, %v778, %v790
        %v856 = vsel %vm835, %v780, %v792
        %v857 = vsel %vm835, %v782, %v794
        %v858 = vsel %vm835, %v784, %v796
        %v859 = vsel %vm835, %v786, %v798
        %v860 = vsel %vm835, %v824, %v776
        %v861 = vsel %vm835, %v826, %v778
        %v862 = vsel %vm835, %v828, %v780
        %v863 = vsel %vm835, %v830, %v782
        %v864 = vsel %vm835, %v832, %v784
        %v865 = vsel %vm835, %v834, %v786
        %v866 = vadd.f32 %v745, %v854
        %v867 = vadd.f32 %v746, %v848
        %v868 = vadd.f32 %v747, %v842
        %v869 = vadd.f32 %v748, %v836
        %v870 = vadd.f32 %v749, %v860
        %v871 = vadd.f32 %v750, %v855
        %v872 = vadd.f32 %v751, %v849
        %v873 = vadd.f32 %v752, %v843
        %v874 = vadd.f32 %v753, %v837
        %v875 = vadd.f32 %v754, %v861
        %v876 = vadd.f32 %v755, %v856
        %v877 = vadd.f32 %v756, %v850
        %v878 = vadd.f32 %v757, %v844
        %v879 = vadd.f32 %v758, %v838
        %v880 = vadd.f32 %v759, %v862
        %v881 = vadd.f32 %v760, %v857
        %v882 = vadd.f32 %v761, %v851
        %v883 = vadd.f32 %v762, %v845
        %v884 = vadd.f32 %v763, %v839
        %v885 = vadd.f32 %v764, %v863
        %v886 = vadd.f32 %v765, %v858
        %v887 = vadd.f32 %v766, %v852
        %v888 = vadd.f32 %v767, %v846
        %v889 = vadd.f32 %v768, %v840
        %v890 = vadd.f32 %v769, %v864
        %v891 = vadd.f32 %v770, %v859
        %v892 = vadd.f32 %v771, %v853
        %v893 = vadd.f32 %v772, %v847
        %v894 = vadd.f32 %v773, %v841
        %v895 = vadd.f32 %v774, %v865
        %896 = vrot.lane.b32.xlu0 %v624, 64
        %v897 = vpop.permute.xlu0 %896
        %898 = vrot.lane.b32.xlu0 %v629, 64
        %v899 = vpop.permute.xlu0 %898
        %900 = vrot.lane.b32.xlu0 %v634, 64
        %v901 = vpop.permute.xlu0 %900
        %902 = vrot.lane.b32.xlu0 %v639, 64
        %v903 = vpop.permute.xlu0 %902
        %904 = vrot.lane.b32.xlu0 %v644, 64
        %v905 = vpop.permute.xlu0 %904
        %906 = vrot.lane.b32.xlu0 %v649, 64
        %v907 = vpop.permute.xlu0 %906
        %908 = vrot.lane.b32.xlu0 %v625, 64
        %v909 = vpop.permute.xlu0 %908
        %910 = vrot.lane.b32.xlu0 %v630, 64
        %v911 = vpop.permute.xlu0 %910
        %912 = vrot.lane.b32.xlu0 %v635, 64
        %v913 = vpop.permute.xlu0 %912
        %914 = vrot.lane.b32.xlu0 %v640, 64
        %v915 = vpop.permute.xlu0 %914
        %916 = vrot.lane.b32.xlu0 %v645, 64
        %v917 = vpop.permute.xlu0 %916
        %918 = vrot.lane.b32.xlu0 %v650, 64
        %v919 = vpop.permute.xlu0 %918
        %920 = vrot.lane.b32.xlu0 %v626, 64
        %v921 = vpop.permute.xlu0 %920
        %922 = vrot.lane.b32.xlu0 %v631, 64
        %v923 = vpop.permute.xlu0 %922
        %924 = vrot.lane.b32.xlu0 %v636, 64
        %v925 = vpop.permute.xlu0 %924
        %926 = vrot.lane.b32.xlu0 %v641, 64
        %v927 = vpop.permute.xlu0 %926
        %928 = vrot.lane.b32.xlu0 %v646, 64
        %v929 = vpop.permute.xlu0 %928
        %930 = vrot.lane.b32.xlu0 %v651, 64
        %v931 = vpop.permute.xlu0 %930
        %932 = vrot.lane.b32.xlu0 %v627, 64
        %v933 = vpop.permute.xlu0 %932
        %934 = vrot.lane.b32.xlu0 %v632, 64
        %v935 = vpop.permute.xlu0 %934
        %936 = vrot.lane.b32.xlu0 %v637, 64
        %v937 = vpop.permute.xlu0 %936
        %938 = vrot.lane.b32.xlu0 %v642, 64
        %v939 = vpop.permute.xlu0 %938
        %940 = vrot.lane.b32.xlu0 %v647, 64
        %v941 = vpop.permute.xlu0 %940
        %942 = vrot.lane.b32.xlu0 %v652, 64
        %v943 = vpop.permute.xlu0 %942
        %944 = vrot.lane.b32.xlu0 %v628, 64
        %v945 = vpop.permute.xlu0 %944
        %946 = vrot.lane.b32.xlu0 %v633, 64
        %v947 = vpop.permute.xlu0 %946
        %948 = vrot.lane.b32.xlu0 %v638, 64
        %v949 = vpop.permute.xlu0 %948
        %950 = vrot.lane.b32.xlu0 %v643, 64
        %v951 = vpop.permute.xlu0 %950
        %952 = vrot.lane.b32.xlu0 %v648, 64
        %v953 = vpop.permute.xlu0 %952
        %954 = vrot.lane.b32.xlu0 %v653, 64
        %v955 = vpop.permute.xlu0 %954
        %vm956 = vcmp.lt.s32.totalorder %v229, 64
        %v957 = vsel %vm956, %v933, %v945
        %v958 = vsel %vm956, %v935, %v947
        %v959 = vsel %vm956, %v937, %v949
        %v960 = vsel %vm956, %v939, %v951
        %v961 = vsel %vm956, %v941, %v953
        %v962 = vsel %vm956, %v943, %v955
        %v963 = vsel %vm956, %v921, %v933
        %v964 = vsel %vm956, %v923, %v935
        %v965 = vsel %vm956, %v925, %v937
        %v966 = vsel %vm956, %v927, %v939
        %v967 = vsel %vm956, %v929, %v941
        %v968 = vsel %vm956, %v931, %v943
        %v969 = vsel %vm956, %v909, %v921
        %v970 = vsel %vm956, %v911, %v923
        %v971 = vsel %vm956, %v913, %v925
        %v972 = vsel %vm956, %v915, %v927
        %v973 = vsel %vm956, %v917, %v929
        %v974 = vsel %vm956, %v919, %v931
        %v975 = vsel %vm956, %v897, %v909
        %v976 = vsel %vm956, %v899, %v911
        %v977 = vsel %vm956, %v901, %v913
        %v978 = vsel %vm956, %v903, %v915
        %v979 = vsel %vm956, %v905, %v917
        %v980 = vsel %vm956, %v907, %v919
        %v981 = vsel %vm956, %v945, %v897
        %v982 = vsel %vm956, %v947, %v899
        %v983 = vsel %vm956, %v949, %v901
        %v984 = vsel %vm956, %v951, %v903
        %v985 = vsel %vm956, %v953, %v905
        %v986 = vsel %vm956, %v955, %v907
        %v987 = vadd.f32 %v866, %v981
        %v988 = vadd.f32 %v867, %v975
        %v989 = vadd.f32 %v868, %v969
        %v990 = vadd.f32 %v869, %v963
        %v991 = vadd.f32 %v870, %v957
        %v992 = vadd.f32 %v871, %v982
        %v993 = vadd.f32 %v872, %v976
        %v994 = vadd.f32 %v873, %v970
        %v995 = vadd.f32 %v874, %v964
        %v996 = vadd.f32 %v875, %v958
        %v997 = vadd.f32 %v876, %v983
        %v998 = vadd.f32 %v877, %v977
        %v999 = vadd.f32 %v878, %v971
        %v1000 = vadd.f32 %v879, %v965
        %v1001 = vadd.f32 %v880, %v959
        %v1002 = vadd.f32 %v881, %v984
        %v1003 = vadd.f32 %v882, %v978
        %v1004 = vadd.f32 %v883, %v972
        %v1005 = vadd.f32 %v884, %v966
        %v1006 = vadd.f32 %v885, %v960
        %v1007 = vadd.f32 %v886, %v985
        %v1008 = vadd.f32 %v887, %v979
        %v1009 = vadd.f32 %v888, %v973
        %v1010 = vadd.f32 %v889, %v967
        %v1011 = vadd.f32 %v890, %v961
        %v1012 = vadd.f32 %v891, %v986
        %v1013 = vadd.f32 %v892, %v980
        %v1014 = vadd.f32 %v893, %v974
        %v1015 = vadd.f32 %v894, %v968
        %v1016 = vadd.f32 %v895, %v962
        %v1017 = vadd.f32 %v987, %v975
        %v1018 = vadd.f32 %v988, %v969
        %v1019 = vadd.f32 %v989, %v963
        %v1020 = vadd.f32 %v990, %v957
        %v1021 = vadd.f32 %v991, %v981
        %v1022 = vadd.f32 %v992, %v976
        %v1023 = vadd.f32 %v993, %v970
        %v1024 = vadd.f32 %v994, %v964
        %v1025 = vadd.f32 %v995, %v958
        %v1026 = vadd.f32 %v996, %v982
        %v1027 = vadd.f32 %v997, %v977
        %v1028 = vadd.f32 %v998, %v971
        %v1029 = vadd.f32 %v999, %v965
        %v1030 = vadd.f32 %v1000, %v959
        %v1031 = vadd.f32 %v1001, %v983
        %v1032 = vadd.f32 %v1002, %v978
        %v1033 = vadd.f32 %v1003, %v972
        %v1034 = vadd.f32 %v1004, %v966
        %v1035 = vadd.f32 %v1005, %v960
        %v1036 = vadd.f32 %v1006, %v984
        %v1037 = vadd.f32 %v1007, %v979
        %v1038 = vadd.f32 %v1008, %v973
        %v1039 = vadd.f32 %v1009, %v967
        %v1040 = vadd.f32 %v1010, %v961
        %v1041 = vadd.f32 %v1011, %v985
        %v1042 = vadd.f32 %v1012, %v980
        %v1043 = vadd.f32 %v1013, %v974
        %v1044 = vadd.f32 %v1014, %v968
        %v1045 = vadd.f32 %v1015, %v962
        %v1046 = vadd.f32 %v1016, %v986
        %v1047 = vrot.slane %v1017, 7
        %v1048 = vrot.slane %v1018, 7
        %v1049 = vrot.slane %v1019, 7
        %v1050 = vrot.slane %v1020, 7
        %v1051 = vrot.slane %v1021, 7
        %v1052 = vrot.slane %v1022, 7
        %v1053 = vrot.slane %v1023, 7
        %v1054 = vrot.slane %v1024, 7
        %v1055 = vrot.slane %v1025, 7
        %v1056 = vrot.slane %v1026, 7
        %v1057 = vrot.slane %v1027, 7
        %v1058 = vrot.slane %v1028, 7
        %v1059 = vrot.slane %v1029, 7
        %v1060 = vrot.slane %v1030, 7
        %v1061 = vrot.slane %v1031, 7
        %v1062 = vrot.slane %v1032, 7
        %v1063 = vrot.slane %v1033, 7
        %v1064 = vrot.slane %v1034, 7
        %v1065 = vrot.slane %v1035, 7
        %v1066 = vrot.slane %v1036, 7
        %v1067 = vrot.slane %v1037, 7
        %v1068 = vrot.slane %v1038, 7
        %v1069 = vrot.slane %v1039, 7
        %v1070 = vrot.slane %v1040, 7
        %v1071 = vrot.slane %v1041, 7
        %v1072 = vrot.slane %v1042, 7
        %v1073 = vrot.slane %v1043, 7
        %v1074 = vrot.slane %v1044, 7
        %v1075 = vrot.slane %v1045, 7
        %v1076 = vrot.slane %v1046, 7
        %v1077 = vlaneseq
        %v1078 = vshrl.u32 %v1077, 7
        %vm1079 = vcmp.lt.s32.totalorder %v1078, 1
        %v1080 = vsel %vm1079, %v1067, %v1072
        %v1081 = vsel %vm1079, %v1068, %v1073
        %v1082 = vsel %vm1079, %v1069, %v1074
        %v1083 = vsel %vm1079, %v1070, %v1075
        %v1084 = vsel %vm1079, %v1071, %v1076
        %v1085 = vsel %vm1079, %v1062, %v1067
        %v1086 = vsel %vm1079, %v1063, %v1068
        %v1087 = vsel %vm1079, %v1064, %v1069
        %v1088 = vsel %vm1079, %v1065, %v1070
        %v1089 = vsel %vm1079, %v1066, %v1071
        %v1090 = vsel %vm1079, %v1057, %v1062
        %v1091 = vsel %vm1079, %v1058, %v1063
        %v1092 = vsel %vm1079, %v1059, %v1064
        %v1093 = vsel %vm1079, %v1060, %v1065
        %v1094 = vsel %vm1079, %v1061, %v1066
        %v1095 = vsel %vm1079, %v1052, %v1057
        %v1096 = vsel %vm1079, %v1053, %v1058
        %v1097 = vsel %vm1079, %v1054, %v1059
        %v1098 = vsel %vm1079, %v1055, %v1060
        %v1099 = vsel %vm1079, %v1056, %v1061
        %v1100 = vsel %vm1079, %v1047, %v1052
        %v1101 = vsel %vm1079, %v1048, %v1053
        %v1102 = vsel %vm1079, %v1049, %v1054
        %v1103 = vsel %vm1079, %v1050, %v1055
        %v1104 = vsel %vm1079, %v1051, %v1056
        %v1105 = vsel %vm1079, %v1072, %v1047
        %v1106 = vsel %vm1079, %v1073, %v1048
        %v1107 = vsel %vm1079, %v1074, %v1049
        %v1108 = vsel %vm1079, %v1075, %v1050
        %v1109 = vsel %vm1079, %v1076, %v1051
        %v1110 = vadd.f32 %v1017, %v1105
        %v1111 = vadd.f32 %v1018, %v1106
        %v1112 = vadd.f32 %v1019, %v1107
        %v1113 = vadd.f32 %v1020, %v1108
        %v1114 = vadd.f32 %v1021, %v1109
        %v1115 = vadd.f32 %v1022, %v1100
        %v1116 = vadd.f32 %v1023, %v1101
        %v1117 = vadd.f32 %v1024, %v1102
        %v1118 = vadd.f32 %v1025, %v1103
        %v1119 = vadd.f32 %v1026, %v1104
        %v1120 = vadd.f32 %v1027, %v1095
        %v1121 = vadd.f32 %v1028, %v1096
        %v1122 = vadd.f32 %v1029, %v1097
        %v1123 = vadd.f32 %v1030, %v1098
        %v1124 = vadd.f32 %v1031, %v1099
        %v1125 = vadd.f32 %v1032, %v1090
        %v1126 = vadd.f32 %v1033, %v1091
        %v1127 = vadd.f32 %v1034, %v1092
        %v1128 = vadd.f32 %v1035, %v1093
        %v1129 = vadd.f32 %v1036, %v1094
        %v1130 = vadd.f32 %v1037, %v1085
        %v1131 = vadd.f32 %v1038, %v1086
        %v1132 = vadd.f32 %v1039, %v1087
        %v1133 = vadd.f32 %v1040, %v1088
        %v1134 = vadd.f32 %v1041, %v1089
        %v1135 = vadd.f32 %v1042, %v1080
        %v1136 = vadd.f32 %v1043, %v1081
        %v1137 = vadd.f32 %v1044, %v1082
        %v1138 = vadd.f32 %v1045, %v1083
        %v1139 = vadd.f32 %v1046, %v1084
        %v1140 = vrot.slane %v1017, 1
        %v1141 = vrot.slane %v1018, 1
        %v1142 = vrot.slane %v1019, 1
        %v1143 = vrot.slane %v1020, 1
        %v1144 = vrot.slane %v1021, 1
        %v1145 = vrot.slane %v1022, 1
        %v1146 = vrot.slane %v1023, 1
        %v1147 = vrot.slane %v1024, 1
        %v1148 = vrot.slane %v1025, 1
        %v1149 = vrot.slane %v1026, 1
        %v1150 = vrot.slane %v1027, 1
        %v1151 = vrot.slane %v1028, 1
        %v1152 = vrot.slane %v1029, 1
        %v1153 = vrot.slane %v1030, 1
        %v1154 = vrot.slane %v1031, 1
        %v1155 = vrot.slane %v1032, 1
        %v1156 = vrot.slane %v1033, 1
        %v1157 = vrot.slane %v1034, 1
        %v1158 = vrot.slane %v1035, 1
        %v1159 = vrot.slane %v1036, 1
        %v1160 = vrot.slane %v1037, 1
        %v1161 = vrot.slane %v1038, 1
        %v1162 = vrot.slane %v1039, 1
        %v1163 = vrot.slane %v1040, 1
        %v1164 = vrot.slane %v1041, 1
        %v1165 = vrot.slane %v1042, 1
        %v1166 = vrot.slane %v1043, 1
        %v1167 = vrot.slane %v1044, 1
        %v1168 = vrot.slane %v1045, 1
        %v1169 = vrot.slane %v1046, 1
        %vm1170 = vcmp.lt.s32.totalorder %v1078, 7
        %v1171 = vsel %vm1170, %v1160, %v1165
        %v1172 = vsel %vm1170, %v1161, %v1166
        %v1173 = vsel %vm1170, %v1162, %v1167
        %v1174 = vsel %vm1170, %v1163, %v1168
        %v1175 = vsel %vm1170, %v1164, %v1169
        %v1176 = vsel %vm1170, %v1155, %v1160
        %v1177 = vsel %vm1170, %v1156, %v1161
        %v1178 = vsel %vm1170, %v1157, %v1162
        %v1179 = vsel %vm1170, %v1158, %v1163
        %v1180 = vsel %vm1170, %v1159, %v1164
        %v1181 = vsel %vm1170, %v1150, %v1155
        %v1182 = vsel %vm1170, %v1151, %v1156
        %v1183 = vsel %vm1170, %v1152, %v1157
        %v1184 = vsel %vm1170, %v1153, %v1158
        %v1185 = vsel %vm1170, %v1154, %v1159
        %v1186 = vsel %vm1170, %v1145, %v1150
        %v1187 = vsel %vm1170, %v1146, %v1151
        %v1188 = vsel %vm1170, %v1147, %v1152
        %v1189 = vsel %vm1170, %v1148, %v1153
        %v1190 = vsel %vm1170, %v1149, %v1154
        %v1191 = vsel %vm1170, %v1140, %v1145
        %v1192 = vsel %vm1170, %v1141, %v1146
        %v1193 = vsel %vm1170, %v1142, %v1147
        %v1194 = vsel %vm1170, %v1143, %v1148
        %v1195 = vsel %vm1170, %v1144, %v1149
        %v1196 = vsel %vm1170, %v1165, %v1140
        %v1197 = vsel %vm1170, %v1166, %v1141
        %v1198 = vsel %vm1170, %v1167, %v1142
        %v1199 = vsel %vm1170, %v1168, %v1143
        %v1200 = vsel %vm1170, %v1169, %v1144
        %v1201 = vadd.f32 %v1110, %v1191
        %v1202 = vadd.f32 %v1111, %v1192
        %v1203 = vadd.f32 %v1112, %v1193
        %v1204 = vadd.f32 %v1113, %v1194
        %v1205 = vadd.f32 %v1114, %v1195
        %v1206 = vadd.f32 %v1115, %v1186
        %v1207 = vadd.f32 %v1116, %v1187
        %v1208 = vadd.f32 %v1117, %v1188
        %v1209 = vadd.f32 %v1118, %v1189
        %v1210 = vadd.f32 %v1119, %v1190
        %v1211 = vadd.f32 %v1120, %v1181
        %v1212 = vadd.f32 %v1121, %v1182
        %v1213 = vadd.f32 %v1122, %v1183
        %v1214 = vadd.f32 %v1123, %v1184
        %v1215 = vadd.f32 %v1124, %v1185
        %v1216 = vadd.f32 %v1125, %v1176
        %v1217 = vadd.f32 %v1126, %v1177
        %v1218 = vadd.f32 %v1127, %v1178
        %v1219 = vadd.f32 %v1128, %v1179
        %v1220 = vadd.f32 %v1129, %v1180
        %v1221 = vadd.f32 %v1130, %v1171
        %v1222 = vadd.f32 %v1131, %v1172
        %v1223 = vadd.f32 %v1132, %v1173
        %v1224 = vadd.f32 %v1133, %v1174
        %v1225 = vadd.f32 %v1134, %v1175
        %v1226 = vadd.f32 %v1135, %v1196
        %v1227 = vadd.f32 %v1136, %v1197
        %v1228 = vadd.f32 %v1137, %v1198
        %v1229 = vadd.f32 %v1138, %v1199
        %v1230 = vadd.f32 %v1139, %v1200
        %v1231 = vrot.slane %v1017, 6
        %v1232 = vrot.slane %v1018, 6
        %v1233 = vrot.slane %v1019, 6
        %v1234 = vrot.slane %v1020, 6
        %v1235 = vrot.slane %v1021, 6
        %v1236 = vrot.slane %v1022, 6
        %v1237 = vrot.slane %v1023, 6
        %v1238 = vrot.slane %v1024, 6
        %v1239 = vrot.slane %v1025, 6
        %v1240 = vrot.slane %v1026, 6
        %v1241 = vrot.slane %v1027, 6
        %v1242 = vrot.slane %v1028, 6
        %v1243 = vrot.slane %v1029, 6
        %v1244 = vrot.slane %v1030, 6
        %v1245 = vrot.slane %v1031, 6
        %v1246 = vrot.slane %v1032, 6
        %v1247 = vrot.slane %v1033, 6
        %v1248 = vrot.slane %v1034, 6
        %v1249 = vrot.slane %v1035, 6
        %v1250 = vrot.slane %v1036, 6
        %v1251 = vrot.slane %v1037, 6
        %v1252 = vrot.slane %v1038, 6
        %v1253 = vrot.slane %v1039, 6
        %v1254 = vrot.slane %v1040, 6
        %v1255 = vrot.slane %v1041, 6
        %v1256 = vrot.slane %v1042, 6
        %v1257 = vrot.slane %v1043, 6
        %v1258 = vrot.slane %v1044, 6
        %v1259 = vrot.slane %v1045, 6
        %v1260 = vrot.slane %v1046, 6
        %vm1261 = vcmp.lt.s32.totalorder %v1078, 2
        %v1262 = vsel %vm1261, %v1251, %v1256
        %v1263 = vsel %vm1261, %v1252, %v1257
        %v1264 = vsel %vm1261, %v1253, %v1258
        %v1265 = vsel %vm1261, %v1254, %v1259
        %v1266 = vsel %vm1261, %v1255, %v1260
        %v1267 = vsel %vm1261, %v1246, %v1251
        %v1268 = vsel %vm1261, %v1247, %v1252
        %v1269 = vsel %vm1261, %v1248, %v1253
        %v1270 = vsel %vm1261, %v1249, %v1254
        %v1271 = vsel %vm1261, %v1250, %v1255
        %v1272 = vsel %vm1261, %v1241, %v1246
        %v1273 = vsel %vm1261, %v1242, %v1247
        %v1274 = vsel %vm1261, %v1243, %v1248
        %v1275 = vsel %vm1261, %v1244, %v1249
        %v1276 = vsel %vm1261, %v1245, %v1250
        %v1277 = vsel %vm1261, %v1236, %v1241
        %v1278 = vsel %vm1261, %v1237, %v1242
        %v1279 = vsel %vm1261, %v1238, %v1243
        %v1280 = vsel %vm1261, %v1239, %v1244
        %v1281 = vsel %vm1261, %v1240, %v1245
        %v1282 = vsel %vm1261, %v1231, %v1236
        %v1283 = vsel %vm1261, %v1232, %v1237
        %v1284 = vsel %vm1261, %v1233, %v1238
        %v1285 = vsel %vm1261, %v1234, %v1239
        %v1286 = vsel %vm1261, %v1235, %v1240
        %v1287 = vsel %vm1261, %v1256, %v1231
        %v1288 = vsel %vm1261, %v1257, %v1232
        %v1289 = vsel %vm1261, %v1258, %v1233
        %v1290 = vsel %vm1261, %v1259, %v1234
        %v1291 = vsel %vm1261, %v1260, %v1235
        %v1292 = vadd.f32 %v1201, %v1287
        %v1293 = vadd.f32 %v1202, %v1288
        %v1294 = vadd.f32 %v1203, %v1289
        %v1295 = vadd.f32 %v1204, %v1290
        %v1296 = vadd.f32 %v1205, %v1291
        %v1297 = vadd.f32 %v1206, %v1282
        %v1298 = vadd.f32 %v1207, %v1283
        %v1299 = vadd.f32 %v1208, %v1284
        %v1300 = vadd.f32 %v1209, %v1285
        %v1301 = vadd.f32 %v1210, %v1286
        %v1302 = vadd.f32 %v1211, %v1277
        %v1303 = vadd.f32 %v1212, %v1278
        %v1304 = vadd.f32 %v1213, %v1279
        %v1305 = vadd.f32 %v1214, %v1280
        %v1306 = vadd.f32 %v1215, %v1281
        %v1307 = vadd.f32 %v1216, %v1272
        %v1308 = vadd.f32 %v1217, %v1273
        %v1309 = vadd.f32 %v1218, %v1274
        %v1310 = vadd.f32 %v1219, %v1275
        %v1311 = vadd.f32 %v1220, %v1276
        %v1312 = vadd.f32 %v1221, %v1267
        %v1313 = vadd.f32 %v1222, %v1268
        %v1314 = vadd.f32 %v1223, %v1269
        %v1315 = vadd.f32 %v1224, %v1270
        %v1316 = vadd.f32 %v1225, %v1271
        %v1317 = vadd.f32 %v1226, %v1262
        %v1318 = vadd.f32 %v1227, %v1263
        %v1319 = vadd.f32 %v1228, %v1264
        %v1320 = vadd.f32 %v1229, %v1265
        %v1321 = vadd.f32 %v1230, %v1266
        %v1322 = vrot.slane %v1017, 2
        %v1323 = vrot.slane %v1018, 2
        %v1324 = vrot.slane %v1019, 2
        %v1325 = vrot.slane %v1020, 2
        %v1326 = vrot.slane %v1021, 2
        %v1327 = vrot.slane %v1022, 2
        %v1328 = vrot.slane %v1023, 2
        %v1329 = vrot.slane %v1024, 2
        %v1330 = vrot.slane %v1025, 2
        %v1331 = vrot.slane %v1026, 2
        %v1332 = vrot.slane %v1027, 2
        %v1333 = vrot.slane %v1028, 2
        %v1334 = vrot.slane %v1029, 2
        %v1335 = vrot.slane %v1030, 2
        %v1336 = vrot.slane %v1031, 2
        %v1337 = vrot.slane %v1032, 2
        %v1338 = vrot.slane %v1033, 2
        %v1339 = vrot.slane %v1034, 2
        %v1340 = vrot.slane %v1035, 2
        %v1341 = vrot.slane %v1036, 2
        %v1342 = vrot.slane %v1037, 2
        %v1343 = vrot.slane %v1038, 2
        %v1344 = vrot.slane %v1039, 2
        %v1345 = vrot.slane %v1040, 2
        %v1346 = vrot.slane %v1041, 2
        %v1347 = vrot.slane %v1042, 2
        %v1348 = vrot.slane %v1043, 2
        %v1349 = vrot.slane %v1044, 2
        %v1350 = vrot.slane %v1045, 2
        %v1351 = vrot.slane %v1046, 2
        %vm1352 = vcmp.lt.s32.totalorder %v1078, 6
        %v1353 = vsel %vm1352, %v1342, %v1347
        %v1354 = vsel %vm1352, %v1343, %v1348
        %v1355 = vsel %vm1352, %v1344, %v1349
        %v1356 = vsel %vm1352, %v1345, %v1350
        %v1357 = vsel %vm1352, %v1346, %v1351
        %v1358 = vsel %vm1352, %v1337, %v1342
        %v1359 = vsel %vm1352, %v1338, %v1343
        %v1360 = vsel %vm1352, %v1339, %v1344
        %v1361 = vsel %vm1352, %v1340, %v1345
        %v1362 = vsel %vm1352, %v1341, %v1346
        %v1363 = vsel %vm1352, %v1332, %v1337
        %v1364 = vsel %vm1352, %v1333, %v1338
        %v1365 = vsel %vm1352, %v1334, %v1339
        %v1366 = vsel %vm1352, %v1335, %v1340
        %v1367 = vsel %vm1352, %v1336, %v1341
        %v1368 = vsel %vm1352, %v1327, %v1332
        %v1369 = vsel %vm1352, %v1328, %v1333
        %v1370 = vsel %vm1352, %v1329, %v1334
        %v1371 = vsel %vm1352, %v1330, %v1335
        %v1372 = vsel %vm1352, %v1331, %v1336
        %v1373 = vsel %vm1352, %v1322, %v1327
        %v1374 = vsel %vm1352, %v1323, %v1328
        %v1375 = vsel %vm1352, %v1324, %v1329
        %v1376 = vsel %vm1352, %v1325, %v1330
        %v1377 = vsel %vm1352, %v1326, %v1331
        %v1378 = vsel %vm1352, %v1347, %v1322
        %v1379 = vsel %vm1352, %v1348, %v1323
        %v1380 = vsel %vm1352, %v1349, %v1324
        %v1381 = vsel %vm1352, %v1350, %v1325
        %v1382 = vsel %vm1352, %v1351, %v1326
        %v1383 = vadd.f32 %v1292, %v1373
        %v1384 = vadd.f32 %v1293, %v1374
        %v1385 = vadd.f32 %v1294, %v1375
        %v1386 = vadd.f32 %v1295, %v1376
        %v1387 = vadd.f32 %v1296, %v1377
        %v1388 = vadd.f32 %v1297, %v1368
        %v1389 = vadd.f32 %v1298, %v1369
        %v1390 = vadd.f32 %v1299, %v1370
        %v1391 = vadd.f32 %v1300, %v1371
        %v1392 = vadd.f32 %v1301, %v1372
        %v1393 = vadd.f32 %v1302, %v1363
        %v1394 = vadd.f32 %v1303, %v1364
        %v1395 = vadd.f32 %v1304, %v1365
        %v1396 = vadd.f32 %v1305, %v1366
        %v1397 = vadd.f32 %v1306, %v1367
        %v1398 = vadd.f32 %v1307, %v1358
        %v1399 = vadd.f32 %v1308, %v1359
        %v1400 = vadd.f32 %v1309, %v1360
        %v1401 = vadd.f32 %v1310, %v1361
        %v1402 = vadd.f32 %v1311, %v1362
        %v1403 = vadd.f32 %v1312, %v1353
        %v1404 = vadd.f32 %v1313, %v1354
        %v1405 = vadd.f32 %v1314, %v1355
        %v1406 = vadd.f32 %v1315, %v1356
        %v1407 = vadd.f32 %v1316, %v1357
        %v1408 = vadd.f32 %v1317, %v1378
        %v1409 = vadd.f32 %v1318, %v1379
        %v1410 = vadd.f32 %v1319, %v1380
        %v1411 = vadd.f32 %v1320, %v1381
        %v1412 = vadd.f32 %v1321, %v1382
        %1413 = vst [vmem:[%s135] sm:$0xff] %v1383
        %1414 = vst [vmem:[%s135 + $0x8] sm:$0xff] %v1384
        %1415 = vst [vmem:[%s135 + $0x10] sm:$0xff] %v1385
        %1416 = vst [vmem:[%s135 + $0x18] sm:$0xff] %v1386
        %1417 = vst [vmem:[%s135 + $0x20] sm:$0xff] %v1387
        %1418 = vst [vmem:[%s135 + $0x28] sm:$0xff] %v1388
        %1419 = vst [vmem:[%s135 + $0x30] sm:$0xff] %v1389
        %1420 = vst [vmem:[%s135 + $0x38] sm:$0xff] %v1390
        %1421 = vst [vmem:[%s135 + $0x40] sm:$0xff] %v1391
        %1422 = vst [vmem:[%s135 + $0x48] sm:$0xff] %v1392
        %1423 = vst [vmem:[%s135 + $0x50] sm:$0xff] %v1393
        %1424 = vst [vmem:[%s135 + $0x58] sm:$0xff] %v1394
        %1425 = vst [vmem:[%s135 + $0x60] sm:$0xff] %v1395
        %1426 = vst [vmem:[%s135 + $0x68] sm:$0xff] %v1396
        %1427 = vst [vmem:[%s135 + $0x70] sm:$0xff] %v1397
        %1428 = vst [vmem:[%s135 + $0x78] sm:$0xff] %v1398
        %1429 = vst [vmem:[%s135 + $0x80] sm:$0xff] %v1399
        %1430 = vst [vmem:[%s135 + $0x88] sm:$0xff] %v1400
        %1431 = vst [vmem:[%s135 + $0x90] sm:$0xff] %v1401
        %1432 = vst [vmem:[%s135 + $0x98] sm:$0xff] %v1402
        %1433 = vst [vmem:[%s135 + $0xa0] sm:$0xff] %v1403
        %1434 = vst [vmem:[%s135 + $0xa8] sm:$0xff] %v1404
        %1435 = vst [vmem:[%s135 + $0xb0] sm:$0xff] %v1405
        %1436 = vst [vmem:[%s135 + $0xb8] sm:$0xff] %v1406
        %1437 = vst [vmem:[%s135 + $0xc0] sm:$0xff] %v1407
        %1438 = vst [vmem:[%s135 + $0xc8] sm:$0xff] %v1408
        %1439 = vst [vmem:[%s135 + $0xd0] sm:$0xff] %v1409
        %1440 = vst [vmem:[%s135 + $0xd8] sm:$0xff] %v1410
        %1441 = vst [vmem:[%s135 + $0xe0] sm:$0xff] %v1411
        %1442 = vst [vmem:[%s135 + $0xe8] sm:$0xff] %v1412
        %s1443 = sand.u32 %s52, 1
        %s1444 = scalar_lea.sflag [#allocation4], %s1443
        %s1445 = sand.u32 %s52, 1
        %s1446 = smul.addr %s1445, 240
        %s1447 = scalar_lea.vmem [#allocation5], %s1446
        // Predicated region
        $region29: #{tpu_custom_call.1} parent=23 // pred_check
          %p1448 = pneg %p62
        $region30: #{tpu_custom_call.1} parent=23 // pred_check_branch
          %1450 = sbr.rel (%p1448) target = $region32
        $region31: #{tpu_custom_call.1} parent=23 // pred_region
          %s1451 = smul.u32 6, %s18
          %s1453 = ssub.s32 3840, 3840
          %1454 = vsyncadd %s1444, %s1453
          %s1455 = smul.addr %s1451, 5
          %s1456 = smul.addr %s1455, 128
          %s1457 = scalar_lea.hbm %s1, %s1456
          %s1458 = sshll.u32 %s1447, 4
          %s1459 = int_to_ptr.vmem [resolvable:$true] %s1458
          %1464 = dma.vmem_to_hbm [thread:$0]  %s1459, 3840, %s1457, %s1444, 640, 640, 40
        $region32: #{tpu_custom_call.1} parent=23 // pred_fallthru
          _
      $region24: #{tpu_custom_call.1} parent=5 // pred_fallthru
        _
      %p1465 = scmp.le.s32.totalorder 2, %s13
      // Predicated region
      $region33: #{tpu_custom_call.1} parent=5 // pred_check
        %p1466 = pneg %p1465
      $region34: #{tpu_custom_call.1} parent=5 // pred_check_branch
        %1468 = sbr.rel (%p1466) target = $region36
      $region35: #{tpu_custom_call.1} parent=5 // pred_region
        %s1469 = ssub.s32 %s13, 2
        // Predicated region
        $region37: #{tpu_custom_call.1} parent=35 // pred_check
          %p1470 = pneg %p68
        $region38: #{tpu_custom_call.1} parent=35 // pred_check_branch
          %1472 = sbr.rel (%p1470) target = $region40
        $region39: #{tpu_custom_call.1} parent=35 // pred_region
          %s1473 = sand.u32 %s53, 1
          %s1474 = scalar_lea.sflag [#allocation4], %s1473
          %s1475 = sand.u32 %s53, 1
          %s1476 = smul.addr %s1475, 240
          %s1477 = scalar_lea.vmem [#allocation5], %s1476
          %1478 = dma.done %s1474, 3840
        $region40: #{tpu_custom_call.1} parent=35 // pred_fallthru
          _
      $region36: #{tpu_custom_call.1} parent=5 // pred_fallthru
        _
    $region6: #{tpu_custom_call.1} parent=1 // loop_footer
      %s17 = sadd.s32 1, %s13
    $region7: #{tpu_custom_call.1} parent=1 // loop_footer_branch
      %12 = sbr.rel target = $region3
    $region8: #{tpu_custom_call.1} parent=1 // loop_exit
      _
    %1479 = vsyncpa [#allocation3], 1
    %s1480 = scalar_lea.sflag [#allocation3], 1
    %1481 = vsyncpa %s1480, 1
    %1482 = vsyncpa [#allocation4], 1
    %s1483 = scalar_lea.sflag [#allocation4], 1
    %1484 = vsyncpa %s1483, 1

</llo_original>
